<compile_context>
chip_gen: v6e
topology: v6e:2x2x1
jax: 0.10.0
libtpu: 0.0.40
codegen_flags: <defaults>
</compile_context>

<pallas_src>
import functools

import jax
import jax.numpy as jnp
from jax.experimental import pallas as pl
from jax.experimental.pallas import tpu as pltpu

_SUBLANE = 16  # bf16 packs 16 rows per vreg -> keep batch tiles a multiple of 16


def _round_up(n, m):
    return ((n + m - 1) // m) * m


def _tensorcores_per_chip():
    """Best-effort TensorCore count per chip (2 on v7x, 1 on v5e/v6e)."""
    try:
        info = pltpu.get_tpu_info()
        for attr in ("num_cores", "cores_per_chip", "tensorcores_per_chip",
                     "num_tensorcores"):
            n = getattr(info, attr, None)
            if isinstance(n, int) and n > 0:
                return n
    except Exception:
        pass
    try:
        d = jax.devices()[0]
        for attr in ("num_cores", "core_count"):
            n = getattr(d, attr, None)
            if isinstance(n, int) and n > 0:
                return n
    except Exception:
        pass
    return 1


def _mlp_kernel(x_ref, w1_ref, b1_ref, w2_ref, b2_ref,
                w3_ref, b3_ref, w4_ref, b4_ref, o_ref):
    """Whole 4-layer forward for one batch tile; all weights resident in VMEM.

    Weight/bias blocks have constant index maps, so Pallas DMAs them once and
    keeps them resident across grid steps.  Dots: bf16 operands, f32 accumulate.
    """
    x = x_ref[...].astype(jnp.bfloat16)

    h = jnp.dot(x, w1_ref[...], preferred_element_type=jnp.float32)
    h = jnp.maximum(h + b1_ref[...], 0.0)

    h = jnp.dot(h.astype(jnp.bfloat16), w2_ref[...],
                preferred_element_type=jnp.float32)
    h = jnp.maximum(h + b2_ref[...], 0.0)

    h = jnp.dot(h.astype(jnp.bfloat16), w3_ref[...],
                preferred_element_type=jnp.float32)
    h = jnp.maximum(h + b3_ref[...], 0.0)

    out = jnp.dot(h.astype(jnp.bfloat16), w4_ref[...],
                  preferred_element_type=jnp.float32)
    o_ref[...] = (out + b4_ref[...]).astype(o_ref.dtype)


@functools.partial(jax.jit, static_argnames=("block_b",))
def fully_connected_forward(x, params, *, block_b=512):
    """x: (B, state_dim) f32.  params: bf16 (in, out) weights, f32 (1, out) biases."""
    B, S = x.shape
    w1, b1 = params["w1"], params["b1"]
    w2, b2 = params["w2"], params["b2"]
    w3, b3 = params["w3"], params["b3"]
    w4, b4 = params["w4"], params["b4"]
    H1, H2, H3, A = w1.shape[1], w2.shape[1], w3.shape[1], w4.shape[1]

    # Batch tile: big (fill MXU M dim, amortize per-step overhead), multiple of
    # 16 for bf16 sublane packing, never exceeding the rounded-up batch.
    bb = min(_round_up(block_b, _SUBLANE), _round_up(B, _SUBLANE))
    n_cores = _tensorcores_per_chip()
    if n_cores > 1:
        # v7x: make sure the batch grid has >= 2 parallel steps when possible
        # so both TensorCores get work.
        bb = min(bb, max(_SUBLANE, _round_up(pl.cdiv(B, n_cores), _SUBLANE)))
    Bp = _round_up(B, bb)

    xp = x if Bp == B else jnp.pad(x, ((0, Bp - B), (0, 0)))

    # Full-array blocks (block shape == full dims is always legal), constant index.
    full = lambda arr: pl.BlockSpec(arr.shape, lambda i: (0, 0))

    flops = 2 * Bp * (S * H1 + H1 * H2 + H2 * H3 + H3 * A)
    bytes_accessed = (
        Bp * S * 4 + Bp * A * 4                      # x in, out
        + (w1.size + w2.size + w3.size + w4.size) * 2  # bf16 weights
        + (b1.size + b2.size + b3.size + b4.size) * 4)  # f32 biases

    out = pl.pallas_call(
        _mlp_kernel,
        out_shape=jax.ShapeDtypeStruct((Bp, A), jnp.float32),
        grid_spec=pltpu.PrefetchScalarGridSpec(
            num_scalar_prefetch=0,
            grid=(Bp // bb,),
            in_specs=[
                pl.BlockSpec((bb, S), lambda i: (i, 0)),   # x batch tile, unpadded S
                full(w1), full(b1),
                full(w2), full(b2),
                full(w3), full(b3),
                full(w4), full(b4),
            ],
            out_specs=pl.BlockSpec((bb, A), lambda i: (i, 0)),
        ),
        compiler_params=pltpu.CompilerParams(
            dimension_semantics=("parallel",)),
        cost_estimate=pl.CostEstimate(
            flops=flops, transcendentals=0, bytes_accessed=bytes_accessed),
    )(xp, w1, b1, w2, b2, w3, b3, w4, b4)

    return out if Bp == B else out[:B]


def init_params(key, state_dim, action_dim):
    """Init matching nn.Linear + xavier_uniform_ on the weights.

    Weights: xavier-uniform (gain=1), stored (in, out) in bf16 for the MXU.
    Biases: PyTorch Linear default U(-1/sqrt(fan_in), +1/sqrt(fan_in)), f32 (1, out).
    """
    dims = [(state_dim, 256), (256, 512), (512, 256), (256, action_dim)]
    params = {}
    for idx, (fin, fout) in enumerate(dims, start=1):
        key, kw, kb = jax.random.split(key, 3)
        w_bound = (6.0 / (fin + fout)) ** 0.5
        b_bound = 1.0 / (fin ** 0.5)
        params[f"w{idx}"] = jax.random.uniform(
            kw, (fin, fout), jnp.float32, -w_bound, w_bound).astype(jnp.bfloat16)
        params[f"b{idx}"] = jax.random.uniform(
            kb, (1, fout), jnp.float32, -b_bound, b_bound)
    return params


def reference_forward(x, params):
    """Pure-JAX reference mirroring the kernel's bf16-operand / f32-accumulate math."""
    h = jnp.dot(x.astype(jnp.bfloat16), params["w1"],
                preferred_element_type=jnp.float32) + params["b1"]
    h = jax.nn.relu(h)
    h = jnp.dot(h.astype(jnp.bfloat16), params["w2"],
                preferred_element_type=jnp.float32) + params["b2"]
    h = jax.nn.relu(h)
    h = jnp.dot(h.astype(jnp.bfloat16), params["w3"],
                preferred_element_type=jnp.float32) + params["b3"]
    h = jax.nn.relu(h)
    return jnp.dot(h.astype(jnp.bfloat16), params["w4"],
                   preferred_element_type=jnp.float32) + params["b4"]


if __name__ == "__main__":
    key = jax.random.PRNGKey(0)
    state_dim, action_dim, batch = 8, 4, 2

    kp, kx = jax.random.split(key)
    params = init_params(kp, state_dim, action_dim)
    x = jax.random.normal(kx, (batch, state_dim), jnp.float32)

    out = jax.block_until_ready(fully_connected_forward(x, params))
    ref = reference_forward(x, params)

    assert out.shape == (batch, action_dim), out.shape
    assert jnp.allclose(out, ref, atol=2e-3, rtol=2e-3), "mismatch vs JAX reference"

    print("KERNEL_OK")
</pallas_src>

<mosaic_0001>
module attributes {stable_mosaic.version = 11 : i64} {
  func.func @_mlp_kernel(%arg0: i32, %arg1: memref<16x8xf32, #tpu.memory_space<vmem>>, %arg2: memref<8x256xbf16, #tpu.memory_space<vmem>>, %arg3: memref<1x256xf32, #tpu.memory_space<vmem>>, %arg4: memref<256x512xbf16, #tpu.memory_space<vmem>>, %arg5: memref<1x512xf32, #tpu.memory_space<vmem>>, %arg6: memref<512x256xbf16, #tpu.memory_space<vmem>>, %arg7: memref<1x256xf32, #tpu.memory_space<vmem>>, %arg8: memref<256x4xbf16, #tpu.memory_space<vmem>>, %arg9: memref<1x4xf32, #tpu.memory_space<vmem>>, %arg10: memref<16x4xf32, #tpu.memory_space<vmem>>) attributes {dimension_semantics = [#tpu.dimension_semantics<parallel>], iteration_bounds = array<i64: 1>, scalar_prefetch = 0 : i64, scratch_operands = 0 : i64, tpu.core_type = #tpu.core_type<tc>, window_params = [{transform_indices = @transform_0, window_bounds = array<i64: 16, 8>}, {pipeline_mode = #tpu.pipeline_mode<synchronous>, transform_indices = @transform_1, window_bounds = array<i64: 8, 256>}, {pipeline_mode = #tpu.pipeline_mode<synchronous>, transform_indices = @transform_2, window_bounds = array<i64: 1, 256>}, {pipeline_mode = #tpu.pipeline_mode<synchronous>, transform_indices = @transform_3, window_bounds = array<i64: 256, 512>}, {pipeline_mode = #tpu.pipeline_mode<synchronous>, transform_indices = @transform_4, window_bounds = array<i64: 1, 512>}, {pipeline_mode = #tpu.pipeline_mode<synchronous>, transform_indices = @transform_5, window_bounds = array<i64: 512, 256>}, {pipeline_mode = #tpu.pipeline_mode<synchronous>, transform_indices = @transform_6, window_bounds = array<i64: 1, 256>}, {pipeline_mode = #tpu.pipeline_mode<synchronous>, transform_indices = @transform_7, window_bounds = array<i64: 256, 4>}, {pipeline_mode = #tpu.pipeline_mode<synchronous>, transform_indices = @transform_8, window_bounds = array<i64: 1, 4>}, {transform_indices = @transform_9, window_bounds = array<i64: 16, 4>}]} {
    %c0 = arith.constant 0 : index
    %c0_0 = arith.constant 0 : index
    %0 = vector.load %arg1[%c0, %c0_0] : memref<16x8xf32, #tpu.memory_space<vmem>>, vector<16x8xf32>
    %1 = arith.truncf %0 : vector<16x8xf32> to vector<16x8xbf16>
    %c0_1 = arith.constant 0 : index
    %c0_2 = arith.constant 0 : index
    %2 = vector.load %arg2[%c0_1, %c0_2] : memref<8x256xbf16, #tpu.memory_space<vmem>>, vector<8x256xbf16>
    %cst = arith.constant dense<0.000000e+00> : vector<16x256xf32>
    %3 = tpu.matmul %1, %2, %cst {dimension_numbers = #tpu.dot_dimension_numbers<[1], [0], [0], [1], [0, 0, 1, 1], [], []>} : vector<16x8xbf16>, vector<8x256xbf16>, vector<16x256xf32> -> vector<16x256xf32>
    %c0_3 = arith.constant 0 : index
    %c0_4 = arith.constant 0 : index
    %4 = vector.load %arg3[%c0_3, %c0_4] : memref<1x256xf32, #tpu.memory_space<vmem>>, vector<1x256xf32>
    %5 = vector.broadcast %4 : vector<1x256xf32> to vector<16x256xf32>
    %6 = arith.addf %3, %5 : vector<16x256xf32>
    %cst_5 = arith.constant 0.000000e+00 : f32
    %7 = vector.broadcast %cst_5 : f32 to vector<16x256xf32>
    %8 = arith.maximumf %6, %7 : vector<16x256xf32>
    %9 = arith.truncf %8 : vector<16x256xf32> to vector<16x256xbf16>
    %c0_6 = arith.constant 0 : index
    %c0_7 = arith.constant 0 : index
    %10 = vector.load %arg4[%c0_6, %c0_7] : memref<256x512xbf16, #tpu.memory_space<vmem>>, vector<256x512xbf16>
    %cst_8 = arith.constant dense<0.000000e+00> : vector<16x512xf32>
    %11 = tpu.matmul %9, %10, %cst_8 {dimension_numbers = #tpu.dot_dimension_numbers<[1], [0], [0], [1], [0, 0, 1, 1], [], []>} : vector<16x256xbf16>, vector<256x512xbf16>, vector<16x512xf32> -> vector<16x512xf32>
    %c0_9 = arith.constant 0 : index
    %c0_10 = arith.constant 0 : index
    %12 = vector.load %arg5[%c0_9, %c0_10] : memref<1x512xf32, #tpu.memory_space<vmem>>, vector<1x512xf32>
    %13 = vector.broadcast %12 : vector<1x512xf32> to vector<16x512xf32>
    %14 = arith.addf %11, %13 : vector<16x512xf32>
    %cst_11 = arith.constant 0.000000e+00 : f32
    %15 = vector.broadcast %cst_11 : f32 to vector<16x512xf32>
    %16 = arith.maximumf %14, %15 : vector<16x512xf32>
    %17 = arith.truncf %16 : vector<16x512xf32> to vector<16x512xbf16>
    %c0_12 = arith.constant 0 : index
    %c0_13 = arith.constant 0 : index
    %18 = vector.load %arg6[%c0_12, %c0_13] : memref<512x256xbf16, #tpu.memory_space<vmem>>, vector<512x256xbf16>
    %cst_14 = arith.constant dense<0.000000e+00> : vector<16x256xf32>
    %19 = tpu.matmul %17, %18, %cst_14 {dimension_numbers = #tpu.dot_dimension_numbers<[1], [0], [0], [1], [0, 0, 1, 1], [], []>} : vector<16x512xbf16>, vector<512x256xbf16>, vector<16x256xf32> -> vector<16x256xf32>
    %c0_15 = arith.constant 0 : index
    %c0_16 = arith.constant 0 : index
    %20 = vector.load %arg7[%c0_15, %c0_16] : memref<1x256xf32, #tpu.memory_space<vmem>>, vector<1x256xf32>
    %21 = vector.broadcast %20 : vector<1x256xf32> to vector<16x256xf32>
    %22 = arith.addf %19, %21 : vector<16x256xf32>
    %cst_17 = arith.constant 0.000000e+00 : f32
    %23 = vector.broadcast %cst_17 : f32 to vector<16x256xf32>
    %24 = arith.maximumf %22, %23 : vector<16x256xf32>
    %25 = arith.truncf %24 : vector<16x256xf32> to vector<16x256xbf16>
    %c0_18 = arith.constant 0 : index
    %c0_19 = arith.constant 0 : index
    %26 = vector.load %arg8[%c0_18, %c0_19] : memref<256x4xbf16, #tpu.memory_space<vmem>>, vector<256x4xbf16>
    %cst_20 = arith.constant dense<0.000000e+00> : vector<16x4xf32>
    %27 = tpu.matmul %25, %26, %cst_20 {dimension_numbers = #tpu.dot_dimension_numbers<[1], [0], [0], [1], [0, 0, 1, 1], [], []>} : vector<16x256xbf16>, vector<256x4xbf16>, vector<16x4xf32> -> vector<16x4xf32>
    %c0_21 = arith.constant 0 : index
    %c0_22 = arith.constant 0 : index
    %28 = vector.load %arg9[%c0_21, %c0_22] : memref<1x4xf32, #tpu.memory_space<vmem>>, vector<1x4xf32>
    %29 = vector.broadcast %28 : vector<1x4xf32> to vector<16x4xf32>
    %30 = arith.addf %27, %29 : vector<16x4xf32>
    %c0_23 = arith.constant 0 : index
    %c0_24 = arith.constant 0 : index
    %31 = vector.load %arg10[%c0_23, %c0_24] : memref<16x4xf32, #tpu.memory_space<vmem>>, vector<16x4xf32>
    tpu.vector_store %arg10[%c0_23, %c0_24], %30 {strides = array<i32>} : memref<16x4xf32, #tpu.memory_space<vmem>>, vector<16x4xf32>,
    return
  }
  func.func @transform_0(%arg0: i32) -> (i32, i32) {
    %c0_i32 = arith.constant 0 : i32
    %c0_i32_0 = arith.constant 0 : i32
    return %arg0, %c0_i32 : i32, i32
  }
  func.func @transform_1(%arg0: i32) -> (i32, i32) {
    %c0_i32 = arith.constant 0 : i32
    %c0_i32_0 = arith.constant 0 : i32
    %c0_i32_1 = arith.constant 0 : i32
    return %c0_i32, %c0_i32_0 : i32, i32
  }
  func.func @transform_2(%arg0: i32) -> (i32, i32) {
    %c0_i32 = arith.constant 0 : i32
    %c0_i32_0 = arith.constant 0 : i32
    %c0_i32_1 = arith.constant 0 : i32
    return %c0_i32, %c0_i32_0 : i32, i32
  }
  func.func @transform_3(%arg0: i32) -> (i32, i32) {
    %c0_i32 = arith.constant 0 : i32
    %c0_i32_0 = arith.constant 0 : i32
    %c0_i32_1 = arith.constant 0 : i32
    return %c0_i32, %c0_i32_0 : i32, i32
  }
  func.func @transform_4(%arg0: i32) -> (i32, i32) {
    %c0_i32 = arith.constant 0 : i32
    %c0_i32_0 = arith.constant 0 : i32
    %c0_i32_1 = arith.constant 0 : i32
    return %c0_i32, %c0_i32_0 : i32, i32
  }
  func.func @transform_5(%arg0: i32) -> (i32, i32) {
    %c0_i32 = arith.constant 0 : i32
    %c0_i32_0 = arith.constant 0 : i32
    %c0_i32_1 = arith.constant 0 : i32
    return %c0_i32, %c0_i32_0 : i32, i32
  }
  func.func @transform_6(%arg0: i32) -> (i32, i32) {
    %c0_i32 = arith.constant 0 : i32
    %c0_i32_0 = arith.constant 0 : i32
    %c0_i32_1 = arith.constant 0 : i32
    return %c0_i32, %c0_i32_0 : i32, i32
  }
  func.func @transform_7(%arg0: i32) -> (i32, i32) {
    %c0_i32 = arith.constant 0 : i32
    %c0_i32_0 = arith.constant 0 : i32
    %c0_i32_1 = arith.constant 0 : i32
    return %c0_i32, %c0_i32_0 : i32, i32
  }
  func.func @transform_8(%arg0: i32) -> (i32, i32) {
    %c0_i32 = arith.constant 0 : i32
    %c0_i32_0 = arith.constant 0 : i32
    %c0_i32_1 = arith.constant 0 : i32
    return %c0_i32, %c0_i32_0 : i32, i32
  }
  func.func @transform_9(%arg0: i32) -> (i32, i32) {
    %c0_i32 = arith.constant 0 : i32
    %c0_i32_0 = arith.constant 0 : i32
    return %arg0, %c0_i32 : i32, i32
  }
}

</mosaic_0001>

<llo_original>
// kernel: fully_connected_forward.1
$region0: #{fully_connected_forward.1}
  #allocation0 [shape = 'u32[]', space=smem, size = 0x4, offset = 0x4, fixed_abs, tag = 'smem constant byte address 0x4 - core index']
  #allocation1 [shape = 'u32[144,128]{1,0:T(1,128)}', space=vmem, size = 0x12000, scoped, tag = 'internal scratch']
  %s0 = inlined_call_operand.vmem [shape: f32[16,8], index: 0, kind: input, shape index: {}]
  %s1 = inlined_call_operand.vmem [shape: bf16[8,256], index: 1, kind: input, shape index: {}]
  %s2 = inlined_call_operand.vmem [shape: f32[1,256], index: 2, kind: input, shape index: {}]
  %s3 = inlined_call_operand.hbm [shape: bf16[256,512], index: 3, kind: input, shape index: {}]
  %s4 = inlined_call_operand.vmem [shape: f32[1,512], index: 4, kind: input, shape index: {}]
  %s5 = inlined_call_operand.hbm [shape: bf16[512,256], index: 5, kind: input, shape index: {}]
  %s6 = inlined_call_operand.vmem [shape: f32[1,256], index: 6, kind: input, shape index: {}]
  %s7 = inlined_call_operand.vmem [shape: bf16[256,4], index: 7, kind: input, shape index: {}]
  %s8 = inlined_call_operand.vmem [shape: f32[1,4], index: 8, kind: input, shape index: {}]
  %s9 = inlined_call_operand.vmem [shape: f32[16,4], index: 9, kind: output, shape index: {}]
  %s10 = sld [smem:[#allocation0]]
  $region54: #{fully_connected_forward.1} parent=0
    _
  %s12 = ssub.s32 1, %s10
  %s13 = scalar_select 0, %s12, %s10
  $region1: #{fully_connected_forward.1} parent=0
    #allocation2 [shape = 'u8[262144]{0}', space=vmem, size = 0x40000, scoped, tag = 'input window, operand 3, single buffered']
    #allocation3 [shape = 's32[1]{0}', space=sflag, size = 0x4, scoped, tag = 'scoped memory for fully_connected_forward.1']
    #allocation4 [shape = 'u8[262144]{0}', space=vmem, size = 0x40000, scoped, tag = 'input window, operand 5, single buffered']
    #allocation5 [shape = 's32[1]{0}', space=sflag, size = 0x4, scoped, tag = 'scoped memory for fully_connected_forward.1']
    %14 = vsyncpa [#allocation3], 0
    %15 = vsyncpa [#allocation5], 0
    // Predicated region
    $region2: #{fully_connected_forward.1} parent=1 // pred_check
      _
    $region3: #{fully_connected_forward.1} parent=1 // pred_check_branch
      %17 = sbr.rel (0) target = $region5
    $region4: #{fully_connected_forward.1} parent=1 // pred_region
      _
    $region5: #{fully_connected_forward.1} parent=1 // pred_fallthru
      _
    // Predicated region
    $region6: #{fully_connected_forward.1} parent=1 // pred_check
      _
    $region7: #{fully_connected_forward.1} parent=1 // pred_check_branch
      %19 = sbr.rel (0) target = $region9
    $region8: #{fully_connected_forward.1} parent=1 // pred_region
      _
    $region9: #{fully_connected_forward.1} parent=1 // pred_fallthru
      _
    // Predicated region
    $region10: #{fully_connected_forward.1} parent=1 // pred_check
      _
    $region11: #{fully_connected_forward.1} parent=1 // pred_check_branch
      %21 = sbr.rel (0) target = $region13
    $region12: #{fully_connected_forward.1} parent=1 // pred_region
      _
    $region13: #{fully_connected_forward.1} parent=1 // pred_fallthru
      _
    // Predicated region
    $region14: #{fully_connected_forward.1} parent=1 // pred_check
      _
    $region15: #{fully_connected_forward.1} parent=1 // pred_check_branch
      %23 = sbr.rel (0) target = $region17
    $region16: #{fully_connected_forward.1} parent=1 // pred_region
      %s25 = ssub.s32 8192, 8192
      %26 = vsyncadd [#allocation3], %s25
      %s27 = sshll.u32 [#allocation2], 4
      %s28 = int_to_ptr.vmem [resolvable:$true] %s27
      %33 = dma.hbm_to_vmem [thread:$0]  %s3, 8192, %s28, [#allocation3], 256, 256, 16
    $region17: #{fully_connected_forward.1} parent=1 // pred_fallthru
      _
    // Predicated region
    $region18: #{fully_connected_forward.1} parent=1 // pred_check
      _
    $region19: #{fully_connected_forward.1} parent=1 // pred_check_branch
      %35 = sbr.rel (0) target = $region21
    $region20: #{fully_connected_forward.1} parent=1 // pred_region
      _
    $region21: #{fully_connected_forward.1} parent=1 // pred_fallthru
      _
    // Predicated region
    $region22: #{fully_connected_forward.1} parent=1 // pred_check
      _
    $region23: #{fully_connected_forward.1} parent=1 // pred_check_branch
      %37 = sbr.rel (0) target = $region25
    $region24: #{fully_connected_forward.1} parent=1 // pred_region
      %s39 = ssub.s32 8192, 8192
      %40 = vsyncadd [#allocation5], %s39
      %s41 = sshll.u32 [#allocation4], 4
      %s42 = int_to_ptr.vmem [resolvable:$true] %s41
      %47 = dma.hbm_to_vmem [thread:$0]  %s5, 8192, %s42, [#allocation5], 128, 128, 8
    $region25: #{fully_connected_forward.1} parent=1 // pred_fallthru
      _
    // Predicated region
    $region26: #{fully_connected_forward.1} parent=1 // pred_check
      _
    $region27: #{fully_connected_forward.1} parent=1 // pred_check_branch
      %49 = sbr.rel (0) target = $region29
    $region28: #{fully_connected_forward.1} parent=1 // pred_region
      _
    $region29: #{fully_connected_forward.1} parent=1 // pred_fallthru
      _
    // Predicated region
    $region30: #{fully_connected_forward.1} parent=1 // pred_check
      _
    $region31: #{fully_connected_forward.1} parent=1 // pred_check_branch
      %51 = sbr.rel (0) target = $region33
    $region32: #{fully_connected_forward.1} parent=1 // pred_region
      _
    $region33: #{fully_connected_forward.1} parent=1 // pred_fallthru
      _
    // Predicated region
    $region34: #{fully_connected_forward.1} parent=1 // pred_check
      _
    $region35: #{fully_connected_forward.1} parent=1 // pred_check_branch
      %53 = sbr.rel (0) target = $region37
    $region36: #{fully_connected_forward.1} parent=1 // pred_region
      _
    $region37: #{fully_connected_forward.1} parent=1 // pred_fallthru
      _
    // Predicated region
    $region38: #{fully_connected_forward.1} parent=1 // pred_check
      _
    $region39: #{fully_connected_forward.1} parent=1 // pred_check_branch
      %55 = sbr.rel (0) target = $region41
    $region40: #{fully_connected_forward.1} parent=1 // pred_region
      %56 = dma.done [#allocation3], 8192
    $region41: #{fully_connected_forward.1} parent=1 // pred_fallthru
      _
    // Predicated region
    $region42: #{fully_connected_forward.1} parent=1 // pred_check
      _
    $region43: #{fully_connected_forward.1} parent=1 // pred_check_branch
      %58 = sbr.rel (0) target = $region45
    $region44: #{fully_connected_forward.1} parent=1 // pred_region
      %59 = dma.done [#allocation5], 8192
    $region45: #{fully_connected_forward.1} parent=1 // pred_fallthru
      _
    %v61 = vld [vmem:[%s0] sm:$0xff]
    %v62 = vld [vmem:[%s0 + $0x8] sm:$0xff]
    %v63 = vpack.c.bf16 %v62, %v61
    %v64 = vld [vmem:[%s1] sm:$0xff]
    %v65 = vld [vmem:[%s2] sm:$0x3]
    %v67 = vlaneseq
    %v68 = vshrl.u32 %v67, 7
    %v69 = vsub.s32 0, %v68
    %v70 = vrot.slane %v65, %v69
    %v71 = vlaneseq
    %v72 = vshrl.u32 %v71, 7
    %v73 = vsub.s32 1, %v72
    %v74 = vrot.slane %v65, %v73
    %v78 = vunpack.c.l.b16 %v64
    %v79 = vunpack.c.h.b16 %v64
    %v80 = vpack.c.b16 %v78, %v78
    %v81 = vpack.c.b16 %v79, %v79
    %vm82 = vcmask 64512
    %v84 = vsel %vm82, %v63, 0
    %vm86 = vcmask 1043456
    %v88 = vsel %vm86, %v80, 0
    %v91 = vsel %vm86, %v81, 0
    %93 = vmatprep.subr.bf16.mxu0 0
    %94 = vmatpush1.bf16.msra.mxu0 0
    %95 = vmatprep.subr.bf16.mxu0 0
    %96 = vmatpush1.bf16.msra.mxu0 0
    %97 = vmatprep.subr.bf16.mxu0 0
    %98 = vmatpush1.bf16.msra.mxu0 0
    %99 = vmatprep.subr.bf16.mxu0 0
    %100 = vmatpush1.bf16.msra.mxu0 0
    %101 = vmatprep.subr.bf16.mxu0 0
    %102 = vmatpush1.bf16.msra.mxu0 0
    %103 = vmatprep.subr.bf16.mxu0 0
    %104 = vmatpush1.bf16.msra.mxu0 0
    %105 = vmatprep.subr.bf16.mxu0 0
    %106 = vmatpush1.bf16.msra.mxu0 0
    %107 = vmatprep.subr.bf16.mxu0 %v91
    %108 = vmatpush1.bf16.msra.mxu0 %v88
    %109 = vmatprep.subr.bf16.mxu0 0
    %110 = vmatpush2.bf16.msra.mxu0 0
    %111 = vmatprep.subr.bf16.mxu0 0
    %112 = vmatpush2.bf16.msra.mxu0 0
    %113 = vmatprep.subr.bf16.mxu0 0
    %114 = vmatpush2.bf16.msra.mxu0 0
    %115 = vmatprep.subr.bf16.mxu0 0
    %116 = vmatpush2.bf16.msra.mxu0 0
    %117 = vmatprep.subr.bf16.mxu0 0
    %118 = vmatpush2.bf16.msra.mxu0 0
    %119 = vmatprep.subr.bf16.mxu0 0
    %120 = vmatpush2.bf16.msra.mxu0 0
    %121 = vmatprep.subr.bf16.mxu0 0
    %122 = vmatpush2.bf16.msra.mxu0 0
    %123 = vmatprep.subr.bf16.mxu0 0
    %124 = vmatpush2.bf16.msra.mxu0 0
    %125 = vmatprep.mubr.bf16.mxu0 0
    %126 = vmatmul.mubr.bf16.gmra.mxu0 %v84
    %v127 = vpop.f32.mrf.mxu0
    %v128 = vadd.f32 %v70, %v127
    %v129 = vpop.f32.mrf.mxu0
    %v130 = vadd.f32 %v74, %v129
    %v131 = vpop.f32.mrf.mxu0
    %v132 = vadd.f32 %v70, %v131
    %v133 = vpop.f32.mrf.mxu0
    %v134 = vadd.f32 %v74, %v133
    %135 = vdwg.mxu0
    %v136 = vmax.f32 %v128, 0.0
    %v137 = vmax.f32 %v130, 0.0
    %v138 = vmax.f32 %v132, 0.0
    %v139 = vmax.f32 %v134, 0.0
    %v140 = vpack.c.bf16 %v138, %v136
    %v141 = vpack.c.bf16 %v139, %v137
    %v142 = vld [vmem:[#allocation2] sm:$0xff]
    %v143 = vld [vmem:[#allocation2 + $0x8] sm:$0xff]
    %v144 = vld [vmem:[#allocation2 + $0x10] sm:$0xff]
    %v145 = vld [vmem:[#allocation2 + $0x18] sm:$0xff]
    %v146 = vld [vmem:[#allocation2 + $0x20] sm:$0xff]
    %v147 = vld [vmem:[#allocation2 + $0x28] sm:$0xff]
    %v148 = vld [vmem:[#allocation2 + $0x30] sm:$0xff]
    %v149 = vld [vmem:[#allocation2 + $0x38] sm:$0xff]
    %v150 = vld [vmem:[#allocation2 + $0x40] sm:$0xff]
    %v151 = vld [vmem:[#allocation2 + $0x48] sm:$0xff]
    %v152 = vld [vmem:[#allocation2 + $0x50] sm:$0xff]
    %v153 = vld [vmem:[#allocation2 + $0x58] sm:$0xff]
    %v154 = vld [vmem:[#allocation2 + $0x60] sm:$0xff]
    %v155 = vld [vmem:[#allocation2 + $0x68] sm:$0xff]
    %v156 = vld [vmem:[#allocation2 + $0x70] sm:$0xff]
    %v157 = vld [vmem:[#allocation2 + $0x78] sm:$0xff]
    %v158 = vld [vmem:[#allocation2 + $0x80] sm:$0xff]
    %v159 = vld [vmem:[#allocation2 + $0x88] sm:$0xff]
    %v160 = vld [vmem:[#allocation2 + $0x90] sm:$0xff]
    %v161 = vld [vmem:[#allocation2 + $0x98] sm:$0xff]
    %v162 = vld [vmem:[#allocation2 + $0xa0] sm:$0xff]
    %v163 = vld [vmem:[#allocation2 + $0xa8] sm:$0xff]
    %v164 = vld [vmem:[#allocation2 + $0xb0] sm:$0xff]
    %v165 = vld [vmem:[#allocation2 + $0xb8] sm:$0xff]
    %v166 = vld [vmem:[#allocation2 + $0xc0] sm:$0xff]
    %v167 = vld [vmem:[#allocation2 + $0xc8] sm:$0xff]
    %v168 = vld [vmem:[#allocation2 + $0xd0] sm:$0xff]
    %v169 = vld [vmem:[#allocation2 + $0xd8] sm:$0xff]
    %v170 = vld [vmem:[#allocation2 + $0xe0] sm:$0xff]
    %v171 = vld [vmem:[#allocation2 + $0xe8] sm:$0xff]
    %v172 = vld [vmem:[#allocation2 + $0xf0] sm:$0xff]
    %v173 = vld [vmem:[#allocation2 + $0xf8] sm:$0xff]
    %v174 = vld [vmem:[#allocation2 + $0x100] sm:$0xff]
    %v175 = vld [vmem:[#allocation2 + $0x108] sm:$0xff]
    %v176 = vld [vmem:[#allocation2 + $0x110] sm:$0xff]
    %v177 = vld [vmem:[#allocation2 + $0x118] sm:$0xff]
    %v178 = vld [vmem:[#allocation2 + $0x120] sm:$0xff]
    %v179 = vld [vmem:[#allocation2 + $0x128] sm:$0xff]
    %v180 = vld [vmem:[#allocation2 + $0x130] sm:$0xff]
    %v181 = vld [vmem:[#allocation2 + $0x138] sm:$0xff]
    %v182 = vld [vmem:[#allocation2 + $0x140] sm:$0xff]
    %v183 = vld [vmem:[#allocation2 + $0x148] sm:$0xff]
    %v184 = vld [vmem:[#allocation2 + $0x150] sm:$0xff]
    %v185 = vld [vmem:[#allocation2 + $0x158] sm:$0xff]
    %v186 = vld [vmem:[#allocation2 + $0x160] sm:$0xff]
    %v187 = vld [vmem:[#allocation2 + $0x168] sm:$0xff]
    %v188 = vld [vmem:[#allocation2 + $0x170] sm:$0xff]
    %v189 = vld [vmem:[#allocation2 + $0x178] sm:$0xff]
    %v190 = vld [vmem:[#allocation2 + $0x180] sm:$0xff]
    %v191 = vld [vmem:[#allocation2 + $0x188] sm:$0xff]
    %v192 = vld [vmem:[#allocation2 + $0x190] sm:$0xff]
    %v193 = vld [vmem:[#allocation2 + $0x198] sm:$0xff]
    %v194 = vld [vmem:[#allocation2 + $0x1a0] sm:$0xff]
    %v195 = vld [vmem:[#allocation2 + $0x1a8] sm:$0xff]
    %v196 = vld [vmem:[#allocation2 + $0x1b0] sm:$0xff]
    %v197 = vld [vmem:[#allocation2 + $0x1b8] sm:$0xff]
    %v198 = vld [vmem:[#allocation2 + $0x1c0] sm:$0xff]
    %v199 = vld [vmem:[#allocation2 + $0x1c8] sm:$0xff]
    %v200 = vld [vmem:[#allocation2 + $0x1d0] sm:$0xff]
    %v201 = vld [vmem:[#allocation2 + $0x1d8] sm:$0xff]
    %v202 = vld [vmem:[#allocation2 + $0x1e0] sm:$0xff]
    %v203 = vld [vmem:[#allocation2 + $0x1e8] sm:$0xff]
    %v204 = vld [vmem:[#allocation2 + $0x1f0] sm:$0xff]
    %v205 = vld [vmem:[#allocation2 + $0x1f8] sm:$0xff]
    %v206 = vld [vmem:[%s4] sm:$0xf]
    %v208 = vlaneseq
    %v209 = vshrl.u32 %v208, 7
    %v210 = vsub.s32 0, %v209
    %v211 = vrot.slane %v206, %v210
    %v212 = vlaneseq
    %v213 = vshrl.u32 %v212, 7
    %v214 = vsub.s32 1, %v213
    %v215 = vrot.slane %v206, %v214
    %v216 = vlaneseq
    %v217 = vshrl.u32 %v216, 7
    %v218 = vsub.s32 2, %v217
    %v219 = vrot.slane %v206, %v218
    %v220 = vlaneseq
    %v221 = vshrl.u32 %v220, 7
    %v222 = vsub.s32 3, %v221
    %v223 = vrot.slane %v206, %v222
    %v292 = vunpack.c.l.b16 %v142
    %v293 = vunpack.c.h.b16 %v142
    %v294 = vunpack.c.l.b16 %v143
    %v295 = vunpack.c.h.b16 %v143
    %v296 = vunpack.c.l.b16 %v144
    %v297 = vunpack.c.h.b16 %v144
    %v298 = vunpack.c.l.b16 %v145
    %v299 = vunpack.c.h.b16 %v145
    %v300 = vunpack.c.l.b16 %v146
    %v301 = vunpack.c.h.b16 %v146
    %v302 = vunpack.c.l.b16 %v147
    %v303 = vunpack.c.h.b16 %v147
    %v304 = vunpack.c.l.b16 %v148
    %v305 = vunpack.c.h.b16 %v148
    %v306 = vunpack.c.l.b16 %v149
    %v307 = vunpack.c.h.b16 %v149
    %v308 = vunpack.c.l.b16 %v150
    %v309 = vunpack.c.h.b16 %v150
    %v310 = vunpack.c.l.b16 %v151
    %v311 = vunpack.c.h.b16 %v151
    %v312 = vunpack.c.l.b16 %v152
    %v313 = vunpack.c.h.b16 %v152
    %v314 = vunpack.c.l.b16 %v153
    %v315 = vunpack.c.h.b16 %v153
    %v316 = vunpack.c.l.b16 %v154
    %v317 = vunpack.c.h.b16 %v154
    %v318 = vunpack.c.l.b16 %v155
    %v319 = vunpack.c.h.b16 %v155
    %v320 = vunpack.c.l.b16 %v156
    %v321 = vunpack.c.h.b16 %v156
    %v322 = vunpack.c.l.b16 %v157
    %v323 = vunpack.c.h.b16 %v157
    %v324 = vunpack.c.l.b16 %v158
    %v325 = vunpack.c.h.b16 %v158
    %v326 = vunpack.c.l.b16 %v159
    %v327 = vunpack.c.h.b16 %v159
    %v328 = vunpack.c.l.b16 %v160
    %v329 = vunpack.c.h.b16 %v160
    %v330 = vunpack.c.l.b16 %v161
    %v331 = vunpack.c.h.b16 %v161
    %v332 = vunpack.c.l.b16 %v162
    %v333 = vunpack.c.h.b16 %v162
    %v334 = vunpack.c.l.b16 %v163
    %v335 = vunpack.c.h.b16 %v163
    %v336 = vunpack.c.l.b16 %v164
    %v337 = vunpack.c.h.b16 %v164
    %v338 = vunpack.c.l.b16 %v165
    %v339 = vunpack.c.h.b16 %v165
    %v340 = vunpack.c.l.b16 %v166
    %v341 = vunpack.c.h.b16 %v166
    %v342 = vunpack.c.l.b16 %v167
    %v343 = vunpack.c.h.b16 %v167
    %v344 = vunpack.c.l.b16 %v168
    %v345 = vunpack.c.h.b16 %v168
    %v346 = vunpack.c.l.b16 %v169
    %v347 = vunpack.c.h.b16 %v169
    %v348 = vunpack.c.l.b16 %v170
    %v349 = vunpack.c.h.b16 %v170
    %v350 = vunpack.c.l.b16 %v171
    %v351 = vunpack.c.h.b16 %v171
    %v352 = vunpack.c.l.b16 %v172
    %v353 = vunpack.c.h.b16 %v172
    %v354 = vunpack.c.l.b16 %v173
    %v355 = vunpack.c.h.b16 %v173
    %v356 = vunpack.c.l.b16 %v174
    %v357 = vunpack.c.h.b16 %v174
    %v358 = vunpack.c.l.b16 %v175
    %v359 = vunpack.c.h.b16 %v175
    %v360 = vunpack.c.l.b16 %v176
    %v361 = vunpack.c.h.b16 %v176
    %v362 = vunpack.c.l.b16 %v177
    %v363 = vunpack.c.h.b16 %v177
    %v364 = vunpack.c.l.b16 %v178
    %v365 = vunpack.c.h.b16 %v178
    %v366 = vunpack.c.l.b16 %v179
    %v367 = vunpack.c.h.b16 %v179
    %v368 = vunpack.c.l.b16 %v180
    %v369 = vunpack.c.h.b16 %v180
    %v370 = vunpack.c.l.b16 %v181
    %v371 = vunpack.c.h.b16 %v181
    %v372 = vunpack.c.l.b16 %v182
    %v373 = vunpack.c.h.b16 %v182
    %v374 = vunpack.c.l.b16 %v183
    %v375 = vunpack.c.h.b16 %v183
    %v376 = vunpack.c.l.b16 %v184
    %v377 = vunpack.c.h.b16 %v184
    %v378 = vunpack.c.l.b16 %v185
    %v379 = vunpack.c.h.b16 %v185
    %v380 = vunpack.c.l.b16 %v186
    %v381 = vunpack.c.h.b16 %v186
    %v382 = vunpack.c.l.b16 %v187
    %v383 = vunpack.c.h.b16 %v187
    %v384 = vunpack.c.l.b16 %v188
    %v385 = vunpack.c.h.b16 %v188
    %v386 = vunpack.c.l.b16 %v189
    %v387 = vunpack.c.h.b16 %v189
    %v388 = vunpack.c.l.b16 %v190
    %v389 = vunpack.c.h.b16 %v190
    %v390 = vunpack.c.l.b16 %v191
    %v391 = vunpack.c.h.b16 %v191
    %v392 = vunpack.c.l.b16 %v192
    %v393 = vunpack.c.h.b16 %v192
    %v394 = vunpack.c.l.b16 %v193
    %v395 = vunpack.c.h.b16 %v193
    %v396 = vunpack.c.l.b16 %v194
    %v397 = vunpack.c.h.b16 %v194
    %v398 = vunpack.c.l.b16 %v195
    %v399 = vunpack.c.h.b16 %v195
    %v400 = vunpack.c.l.b16 %v196
    %v401 = vunpack.c.h.b16 %v196
    %v402 = vunpack.c.l.b16 %v197
    %v403 = vunpack.c.h.b16 %v197
    %v404 = vunpack.c.l.b16 %v198
    %v405 = vunpack.c.h.b16 %v198
    %v406 = vunpack.c.l.b16 %v199
    %v407 = vunpack.c.h.b16 %v199
    %v408 = vunpack.c.l.b16 %v200
    %v409 = vunpack.c.h.b16 %v200
    %v410 = vunpack.c.l.b16 %v201
    %v411 = vunpack.c.h.b16 %v201
    %v412 = vunpack.c.l.b16 %v202
    %v413 = vunpack.c.h.b16 %v202
    %v414 = vunpack.c.l.b16 %v203
    %v415 = vunpack.c.h.b16 %v203
    %v416 = vunpack.c.l.b16 %v204
    %v417 = vunpack.c.h.b16 %v204
    %v418 = vunpack.c.l.b16 %v205
    %v419 = vunpack.c.h.b16 %v205
    %v420 = vpack.c.b16 %v296, %v292
    %v421 = vpack.c.b16 %v297, %v293
    %v422 = vpack.c.b16 %v298, %v294
    %v423 = vpack.c.b16 %v299, %v295
    %v424 = vpack.c.b16 %v304, %v300
    %v425 = vpack.c.b16 %v305, %v301
    %v426 = vpack.c.b16 %v306, %v302
    %v427 = vpack.c.b16 %v307, %v303
    %v428 = vpack.c.b16 %v312, %v308
    %v429 = vpack.c.b16 %v313, %v309
    %v430 = vpack.c.b16 %v314, %v310
    %v431 = vpack.c.b16 %v315, %v311
    %v432 = vpack.c.b16 %v320, %v316
    %v433 = vpack.c.b16 %v321, %v317
    %v434 = vpack.c.b16 %v322, %v318
    %v435 = vpack.c.b16 %v323, %v319
    %v436 = vpack.c.b16 %v328, %v324
    %v437 = vpack.c.b16 %v329, %v325
    %v438 = vpack.c.b16 %v330, %v326
    %v439 = vpack.c.b16 %v331, %v327
    %v440 = vpack.c.b16 %v336, %v332
    %v441 = vpack.c.b16 %v337, %v333
    %v442 = vpack.c.b16 %v338, %v334
    %v443 = vpack.c.b16 %v339, %v335
    %v444 = vpack.c.b16 %v344, %v340
    %v445 = vpack.c.b16 %v345, %v341
    %v446 = vpack.c.b16 %v346, %v342
    %v447 = vpack.c.b16 %v347, %v343
    %v448 = vpack.c.b16 %v352, %v348
    %v449 = vpack.c.b16 %v353, %v349
    %v450 = vpack.c.b16 %v354, %v350
    %v451 = vpack.c.b16 %v355, %v351
    %v452 = vpack.c.b16 %v360, %v356
    %v453 = vpack.c.b16 %v361, %v357
    %v454 = vpack.c.b16 %v362, %v358
    %v455 = vpack.c.b16 %v363, %v359
    %v456 = vpack.c.b16 %v368, %v364
    %v457 = vpack.c.b16 %v369, %v365
    %v458 = vpack.c.b16 %v370, %v366
    %v459 = vpack.c.b16 %v371, %v367
    %v460 = vpack.c.b16 %v376, %v372
    %v461 = vpack.c.b16 %v377, %v373
    %v462 = vpack.c.b16 %v378, %v374
    %v463 = vpack.c.b16 %v379, %v375
    %v464 = vpack.c.b16 %v384, %v380
    %v465 = vpack.c.b16 %v385, %v381
    %v466 = vpack.c.b16 %v386, %v382
    %v467 = vpack.c.b16 %v387, %v383
    %v468 = vpack.c.b16 %v392, %v388
    %v469 = vpack.c.b16 %v393, %v389
    %v470 = vpack.c.b16 %v394, %v390
    %v471 = vpack.c.b16 %v395, %v391
    %v472 = vpack.c.b16 %v400, %v396
    %v473 = vpack.c.b16 %v401, %v397
    %v474 = vpack.c.b16 %v402, %v398
    %v475 = vpack.c.b16 %v403, %v399
    %v476 = vpack.c.b16 %v408, %v404
    %v477 = vpack.c.b16 %v409, %v405
    %v478 = vpack.c.b16 %v410, %v406
    %v479 = vpack.c.b16 %v411, %v407
    %v480 = vpack.c.b16 %v416, %v412
    %v481 = vpack.c.b16 %v417, %v413
    %v482 = vpack.c.b16 %v418, %v414
    %v483 = vpack.c.b16 %v419, %v415
    %548 = vmatprep.subr.bf16.mxu0 %v449
    %549 = vmatpush1.bf16.msra.mxu0 %v448
    %550 = vmatprep.subr.bf16.mxu0 %v445
    %551 = vmatpush1.bf16.msra.mxu0 %v444
    %552 = vmatprep.subr.bf16.mxu0 %v441
    %553 = vmatpush1.bf16.msra.mxu0 %v440
    %554 = vmatprep.subr.bf16.mxu0 %v437
    %555 = vmatpush1.bf16.msra.mxu0 %v436
    %556 = vmatprep.subr.bf16.mxu0 %v433
    %557 = vmatpush1.bf16.msra.mxu0 %v432
    %558 = vmatprep.subr.bf16.mxu0 %v429
    %559 = vmatpush1.bf16.msra.mxu0 %v428
    %560 = vmatprep.subr.bf16.mxu0 %v425
    %561 = vmatpush1.bf16.msra.mxu0 %v424
    %562 = vmatprep.subr.bf16.mxu0 %v421
    %563 = vmatpush1.bf16.msra.mxu0 %v420
    %564 = vmatprep.subr.bf16.mxu0 %v481
    %565 = vmatpush2.bf16.msra.mxu0 %v480
    %566 = vmatprep.subr.bf16.mxu0 %v477
    %567 = vmatpush2.bf16.msra.mxu0 %v476
    %568 = vmatprep.subr.bf16.mxu0 %v473
    %569 = vmatpush2.bf16.msra.mxu0 %v472
    %570 = vmatprep.subr.bf16.mxu0 %v469
    %571 = vmatpush2.bf16.msra.mxu0 %v468
    %572 = vmatprep.subr.bf16.mxu0 %v465
    %573 = vmatpush2.bf16.msra.mxu0 %v464
    %574 = vmatprep.subr.bf16.mxu0 %v461
    %575 = vmatpush2.bf16.msra.mxu0 %v460
    %576 = vmatprep.subr.bf16.mxu0 %v457
    %577 = vmatpush2.bf16.msra.mxu0 %v456
    %578 = vmatprep.subr.bf16.mxu0 %v453
    %579 = vmatpush2.bf16.msra.mxu0 %v452
    %580 = vmatprep.mubr.bf16.mxu0 %v141
    %581 = vmatmul.mubr.bf16.gmra.mxu0 %v140
    %v582 = vpop.f32.mrf.mxu0
    %v583 = vadd.f32 %v211, %v582
    %v584 = vpop.f32.mrf.mxu0
    %v585 = vadd.f32 %v215, %v584
    %v586 = vpop.f32.mrf.mxu0
    %v587 = vadd.f32 %v211, %v586
    %v588 = vpop.f32.mrf.mxu0
    %v589 = vadd.f32 %v215, %v588
    %590 = vdwg.mxu0
    %591 = vmatprep.subr.bf16.mxu0 %v451
    %592 = vmatpush1.bf16.msra.mxu0 %v450
    %593 = vmatprep.subr.bf16.mxu0 %v447
    %594 = vmatpush1.bf16.msra.mxu0 %v446
    %595 = vmatprep.subr.bf16.mxu0 %v443
    %596 = vmatpush1.bf16.msra.mxu0 %v442
    %597 = vmatprep.subr.bf16.mxu0 %v439
    %598 = vmatpush1.bf16.msra.mxu0 %v438
    %599 = vmatprep.subr.bf16.mxu0 %v435
    %600 = vmatpush1.bf16.msra.mxu0 %v434
    %601 = vmatprep.subr.bf16.mxu0 %v431
    %602 = vmatpush1.bf16.msra.mxu0 %v430
    %603 = vmatprep.subr.bf16.mxu0 %v427
    %604 = vmatpush1.bf16.msra.mxu0 %v426
    %605 = vmatprep.subr.bf16.mxu0 %v423
    %606 = vmatpush1.bf16.msra.mxu0 %v422
    %607 = vmatprep.subr.bf16.mxu0 %v483
    %608 = vmatpush2.bf16.msra.mxu0 %v482
    %609 = vmatprep.subr.bf16.mxu0 %v479
    %610 = vmatpush2.bf16.msra.mxu0 %v478
    %611 = vmatprep.subr.bf16.mxu0 %v475
    %612 = vmatpush2.bf16.msra.mxu0 %v474
    %613 = vmatprep.subr.bf16.mxu0 %v471
    %614 = vmatpush2.bf16.msra.mxu0 %v470
    %615 = vmatprep.subr.bf16.mxu0 %v467
    %616 = vmatpush2.bf16.msra.mxu0 %v466
    %617 = vmatprep.subr.bf16.mxu0 %v463
    %618 = vmatpush2.bf16.msra.mxu0 %v462
    %619 = vmatprep.subr.bf16.mxu0 %v459
    %620 = vmatpush2.bf16.msra.mxu0 %v458
    %621 = vmatprep.subr.bf16.mxu0 %v455
    %622 = vmatpush2.bf16.msra.mxu0 %v454
    %623 = vmatprep.mubr.bf16.mxu0 %v141
    %624 = vmatmul.mubr.bf16.gmra.mxu0 %v140
    %v625 = vpop.f32.mrf.mxu0
    %v626 = vadd.f32 %v219, %v625
    %v627 = vpop.f32.mrf.mxu0
    %v628 = vadd.f32 %v223, %v627
    %v629 = vpop.f32.mrf.mxu0
    %v630 = vadd.f32 %v219, %v629
    %v631 = vpop.f32.mrf.mxu0
    %v632 = vadd.f32 %v223, %v631
    %633 = vdwg.mxu0
    %v634 = vmax.f32 %v583, 0.0
    %v635 = vmax.f32 %v585, 0.0
    %v636 = vmax.f32 %v626, 0.0
    %v637 = vmax.f32 %v628, 0.0
    %v638 = vmax.f32 %v587, 0.0
    %v639 = vmax.f32 %v589, 0.0
    %v640 = vmax.f32 %v630, 0.0
    %v641 = vmax.f32 %v632, 0.0
    %v642 = vpack.c.bf16 %v638, %v634
    %v643 = vpack.c.bf16 %v639, %v635
    %v644 = vpack.c.bf16 %v640, %v636
    %v645 = vpack.c.bf16 %v641, %v637
    %v646 = vld [vmem:[#allocation4] sm:$0xff]
    %v647 = vld [vmem:[#allocation4 + $0x8] sm:$0xff]
    %v648 = vld [vmem:[#allocation4 + $0x10] sm:$0xff]
    %v649 = vld [vmem:[#allocation4 + $0x18] sm:$0xff]
    %v650 = vld [vmem:[#allocation4 + $0x20] sm:$0xff]
    %v651 = vld [vmem:[#allocation4 + $0x28] sm:$0xff]
    %v652 = vld [vmem:[#allocation4 + $0x30] sm:$0xff]
    %v653 = vld [vmem:[#allocation4 + $0x38] sm:$0xff]
    %v654 = vld [vmem:[#allocation4 + $0x40] sm:$0xff]
    %v655 = vld [vmem:[#allocation4 + $0x48] sm:$0xff]
    %v656 = vld [vmem:[#allocation4 + $0x50] sm:$0xff]
    %v657 = vld [vmem:[#allocation4 + $0x58] sm:$0xff]
    %v658 = vld [vmem:[#allocation4 + $0x60] sm:$0xff]
    %v659 = vld [vmem:[#allocation4 + $0x68] sm:$0xff]
    %v660 = vld [vmem:[#allocation4 + $0x70] sm:$0xff]
    %v661 = vld [vmem:[#allocation4 + $0x78] sm:$0xff]
    %v662 = vld [vmem:[#allocation4 + $0x80] sm:$0xff]
    %v663 = vld [vmem:[#allocation4 + $0x88] sm:$0xff]
    %v664 = vld [vmem:[#allocation4 + $0x90] sm:$0xff]
    %v665 = vld [vmem:[#allocation4 + $0x98] sm:$0xff]
    %v666 = vld [vmem:[#allocation4 + $0xa0] sm:$0xff]
    %v667 = vld [vmem:[#allocation4 + $0xa8] sm:$0xff]
    %v668 = vld [vmem:[#allocation4 + $0xb0] sm:$0xff]
    %v669 = vld [vmem:[#allocation4 + $0xb8] sm:$0xff]
    %v670 = vld [vmem:[#allocation4 + $0xc0] sm:$0xff]
    %v671 = vld [vmem:[#allocation4 + $0xc8] sm:$0xff]
    %v672 = vld [vmem:[#allocation4 + $0xd0] sm:$0xff]
    %v673 = vld [vmem:[#allocation4 + $0xd8] sm:$0xff]
    %v674 = vld [vmem:[#allocation4 + $0xe0] sm:$0xff]
    %v675 = vld [vmem:[#allocation4 + $0xe8] sm:$0xff]
    %v676 = vld [vmem:[#allocation4 + $0xf0] sm:$0xff]
    %v677 = vld [vmem:[#allocation4 + $0xf8] sm:$0xff]
    %v678 = vld [vmem:[#allocation4 + $0x100] sm:$0xff]
    %v679 = vld [vmem:[#allocation4 + $0x108] sm:$0xff]
    %v680 = vld [vmem:[#allocation4 + $0x110] sm:$0xff]
    %v681 = vld [vmem:[#allocation4 + $0x118] sm:$0xff]
    %v682 = vld [vmem:[#allocation4 + $0x120] sm:$0xff]
    %v683 = vld [vmem:[#allocation4 + $0x128] sm:$0xff]
    %v684 = vld [vmem:[#allocation4 + $0x130] sm:$0xff]
    %v685 = vld [vmem:[#allocation4 + $0x138] sm:$0xff]
    %v686 = vld [vmem:[#allocation4 + $0x140] sm:$0xff]
    %v687 = vld [vmem:[#allocation4 + $0x148] sm:$0xff]
    %v688 = vld [vmem:[#allocation4 + $0x150] sm:$0xff]
    %v689 = vld [vmem:[#allocation4 + $0x158] sm:$0xff]
    %v690 = vld [vmem:[#allocation4 + $0x160] sm:$0xff]
    %v691 = vld [vmem:[#allocation4 + $0x168] sm:$0xff]
    %v692 = vld [vmem:[#allocation4 + $0x170] sm:$0xff]
    %v693 = vld [vmem:[#allocation4 + $0x178] sm:$0xff]
    %v694 = vld [vmem:[#allocation4 + $0x180] sm:$0xff]
    %v695 = vld [vmem:[#allocation4 + $0x188] sm:$0xff]
    %v696 = vld [vmem:[#allocation4 + $0x190] sm:$0xff]
    %v697 = vld [vmem:[#allocation4 + $0x198] sm:$0xff]
    %v698 = vld [vmem:[#allocation4 + $0x1a0] sm:$0xff]
    %v699 = vld [vmem:[#allocation4 + $0x1a8] sm:$0xff]
    %v700 = vld [vmem:[#allocation4 + $0x1b0] sm:$0xff]
    %v701 = vld [vmem:[#allocation4 + $0x1b8] sm:$0xff]
    %v702 = vld [vmem:[#allocation4 + $0x1c0] sm:$0xff]
    %v703 = vld [vmem:[#allocation4 + $0x1c8] sm:$0xff]
    %v704 = vld [vmem:[#allocation4 + $0x1d0] sm:$0xff]
    %v705 = vld [vmem:[#allocation4 + $0x1d8] sm:$0xff]
    %v706 = vld [vmem:[#allocation4 + $0x1e0] sm:$0xff]
    %v707 = vld [vmem:[#allocation4 + $0x1e8] sm:$0xff]
    %v708 = vld [vmem:[#allocation4 + $0x1f0] sm:$0xff]
    %v709 = vld [vmem:[#allocation4 + $0x1f8] sm:$0xff]
    %v710 = vld [vmem:[%s6] sm:$0x3]
    %v712 = vlaneseq
    %v713 = vshrl.u32 %v712, 7
    %v714 = vsub.s32 0, %v713
    %v715 = vrot.slane %v710, %v714
    %v716 = vlaneseq
    %v717 = vshrl.u32 %v716, 7
    %v718 = vsub.s32 1, %v717
    %v719 = vrot.slane %v710, %v718
    %v786 = vunpack.c.l.b16 %v646
    %v787 = vunpack.c.h.b16 %v646
    %v788 = vunpack.c.l.b16 %v647
    %v789 = vunpack.c.h.b16 %v647
    %v790 = vunpack.c.l.b16 %v648
    %v791 = vunpack.c.h.b16 %v648
    %v792 = vunpack.c.l.b16 %v649
    %v793 = vunpack.c.h.b16 %v649
    %v794 = vunpack.c.l.b16 %v650
    %v795 = vunpack.c.h.b16 %v650
    %v796 = vunpack.c.l.b16 %v651
    %v797 = vunpack.c.h.b16 %v651
    %v798 = vunpack.c.l.b16 %v652
    %v799 = vunpack.c.h.b16 %v652
    %v800 = vunpack.c.l.b16 %v653
    %v801 = vunpack.c.h.b16 %v653
    %v802 = vunpack.c.l.b16 %v654
    %v803 = vunpack.c.h.b16 %v654
    %v804 = vunpack.c.l.b16 %v655
    %v805 = vunpack.c.h.b16 %v655
    %v806 = vunpack.c.l.b16 %v656
    %v807 = vunpack.c.h.b16 %v656
    %v808 = vunpack.c.l.b16 %v657
    %v809 = vunpack.c.h.b16 %v657
    %v810 = vunpack.c.l.b16 %v658
    %v811 = vunpack.c.h.b16 %v658
    %v812 = vunpack.c.l.b16 %v659
    %v813 = vunpack.c.h.b16 %v659
    %v814 = vunpack.c.l.b16 %v660
    %v815 = vunpack.c.h.b16 %v660
    %v816 = vunpack.c.l.b16 %v661
    %v817 = vunpack.c.h.b16 %v661
    %v818 = vunpack.c.l.b16 %v662
    %v819 = vunpack.c.h.b16 %v662
    %v820 = vunpack.c.l.b16 %v663
    %v821 = vunpack.c.h.b16 %v663
    %v822 = vunpack.c.l.b16 %v664
    %v823 = vunpack.c.h.b16 %v664
    %v824 = vunpack.c.l.b16 %v665
    %v825 = vunpack.c.h.b16 %v665
    %v826 = vunpack.c.l.b16 %v666
    %v827 = vunpack.c.h.b16 %v666
    %v828 = vunpack.c.l.b16 %v667
    %v829 = vunpack.c.h.b16 %v667
    %v830 = vunpack.c.l.b16 %v668
    %v831 = vunpack.c.h.b16 %v668
    %v832 = vunpack.c.l.b16 %v669
    %v833 = vunpack.c.h.b16 %v669
    %v834 = vunpack.c.l.b16 %v670
    %v835 = vunpack.c.h.b16 %v670
    %v836 = vunpack.c.l.b16 %v671
    %v837 = vunpack.c.h.b16 %v671
    %v838 = vunpack.c.l.b16 %v672
    %v839 = vunpack.c.h.b16 %v672
    %v840 = vunpack.c.l.b16 %v673
    %v841 = vunpack.c.h.b16 %v673
    %v842 = vunpack.c.l.b16 %v674
    %v843 = vunpack.c.h.b16 %v674
    %v844 = vunpack.c.l.b16 %v675
    %v845 = vunpack.c.h.b16 %v675
    %v846 = vunpack.c.l.b16 %v676
    %v847 = vunpack.c.h.b16 %v676
    %v848 = vunpack.c.l.b16 %v677
    %v849 = vunpack.c.h.b16 %v677
    %v850 = vunpack.c.l.b16 %v678
    %v851 = vunpack.c.h.b16 %v678
    %v852 = vunpack.c.l.b16 %v679
    %v853 = vunpack.c.h.b16 %v679
    %v854 = vunpack.c.l.b16 %v680
    %v855 = vunpack.c.h.b16 %v680
    %v856 = vunpack.c.l.b16 %v681
    %v857 = vunpack.c.h.b16 %v681
    %v858 = vunpack.c.l.b16 %v682
    %v859 = vunpack.c.h.b16 %v682
    %v860 = vunpack.c.l.b16 %v683
    %v861 = vunpack.c.h.b16 %v683
    %v862 = vunpack.c.l.b16 %v684
    %v863 = vunpack.c.h.b16 %v684
    %v864 = vunpack.c.l.b16 %v685
    %v865 = vunpack.c.h.b16 %v685
    %v866 = vunpack.c.l.b16 %v686
    %v867 = vunpack.c.h.b16 %v686
    %v868 = vunpack.c.l.b16 %v687
    %v869 = vunpack.c.h.b16 %v687
    %v870 = vunpack.c.l.b16 %v688
    %v871 = vunpack.c.h.b16 %v688
    %v872 = vunpack.c.l.b16 %v689
    %v873 = vunpack.c.h.b16 %v689
    %v874 = vunpack.c.l.b16 %v690
    %v875 = vunpack.c.h.b16 %v690
    %v876 = vunpack.c.l.b16 %v691
    %v877 = vunpack.c.h.b16 %v691
    %v878 = vunpack.c.l.b16 %v692
    %v879 = vunpack.c.h.b16 %v692
    %v880 = vunpack.c.l.b16 %v693
    %v881 = vunpack.c.h.b16 %v693
    %v882 = vunpack.c.l.b16 %v694
    %v883 = vunpack.c.h.b16 %v694
    %v884 = vunpack.c.l.b16 %v695
    %v885 = vunpack.c.h.b16 %v695
    %v886 = vunpack.c.l.b16 %v696
    %v887 = vunpack.c.h.b16 %v696
    %v888 = vunpack.c.l.b16 %v697
    %v889 = vunpack.c.h.b16 %v697
    %v890 = vunpack.c.l.b16 %v698
    %v891 = vunpack.c.h.b16 %v698
    %v892 = vunpack.c.l.b16 %v699
    %v893 = vunpack.c.h.b16 %v699
    %v894 = vunpack.c.l.b16 %v700
    %v895 = vunpack.c.h.b16 %v700
    %v896 = vunpack.c.l.b16 %v701
    %v897 = vunpack.c.h.b16 %v701
    %v898 = vunpack.c.l.b16 %v702
    %v899 = vunpack.c.h.b16 %v702
    %v900 = vunpack.c.l.b16 %v703
    %v901 = vunpack.c.h.b16 %v703
    %v902 = vunpack.c.l.b16 %v704
    %v903 = vunpack.c.h.b16 %v704
    %v904 = vunpack.c.l.b16 %v705
    %v905 = vunpack.c.h.b16 %v705
    %v906 = vunpack.c.l.b16 %v706
    %v907 = vunpack.c.h.b16 %v706
    %v908 = vunpack.c.l.b16 %v707
    %v909 = vunpack.c.h.b16 %v707
    %v910 = vunpack.c.l.b16 %v708
    %v911 = vunpack.c.h.b16 %v708
    %v912 = vunpack.c.l.b16 %v709
    %v913 = vunpack.c.h.b16 %v709
    %v914 = vpack.c.b16 %v788, %v786
    %v915 = vpack.c.b16 %v789, %v787
    %v916 = vpack.c.b16 %v792, %v790
    %v917 = vpack.c.b16 %v793, %v791
    %v918 = vpack.c.b16 %v796, %v794
    %v919 = vpack.c.b16 %v797, %v795
    %v920 = vpack.c.b16 %v800, %v798
    %v921 = vpack.c.b16 %v801, %v799
    %v922 = vpack.c.b16 %v804, %v802
    %v923 = vpack.c.b16 %v805, %v803
    %v924 = vpack.c.b16 %v808, %v806
    %v925 = vpack.c.b16 %v809, %v807
    %v926 = vpack.c.b16 %v812, %v810
    %v927 = vpack.c.b16 %v813, %v811
    %v928 = vpack.c.b16 %v816, %v814
    %v929 = vpack.c.b16 %v817, %v815
    %v930 = vpack.c.b16 %v820, %v818
    %v931 = vpack.c.b16 %v821, %v819
    %v932 = vpack.c.b16 %v824, %v822
    %v933 = vpack.c.b16 %v825, %v823
    %v934 = vpack.c.b16 %v828, %v826
    %v935 = vpack.c.b16 %v829, %v827
    %v936 = vpack.c.b16 %v832, %v830
    %v937 = vpack.c.b16 %v833, %v831
    %v938 = vpack.c.b16 %v836, %v834
    %v939 = vpack.c.b16 %v837, %v835
    %v940 = vpack.c.b16 %v840, %v838
    %v941 = vpack.c.b16 %v841, %v839
    %v942 = vpack.c.b16 %v844, %v842
    %v943 = vpack.c.b16 %v845, %v843
    %v944 = vpack.c.b16 %v848, %v846
    %v945 = vpack.c.b16 %v849, %v847
    %v946 = vpack.c.b16 %v852, %v850
    %v947 = vpack.c.b16 %v853, %v851
    %v948 = vpack.c.b16 %v856, %v854
    %v949 = vpack.c.b16 %v857, %v855
    %v950 = vpack.c.b16 %v860, %v858
    %v951 = vpack.c.b16 %v861, %v859
    %v952 = vpack.c.b16 %v864, %v862
    %v953 = vpack.c.b16 %v865, %v863
    %v954 = vpack.c.b16 %v868, %v866
    %v955 = vpack.c.b16 %v869, %v867
    %v956 = vpack.c.b16 %v872, %v870
    %v957 = vpack.c.b16 %v873, %v871
    %v958 = vpack.c.b16 %v876, %v874
    %v959 = vpack.c.b16 %v877, %v875
    %v960 = vpack.c.b16 %v880, %v878
    %v961 = vpack.c.b16 %v881, %v879
    %v962 = vpack.c.b16 %v884, %v882
    %v963 = vpack.c.b16 %v885, %v883
    %v964 = vpack.c.b16 %v888, %v886
    %v965 = vpack.c.b16 %v889, %v887
    %v966 = vpack.c.b16 %v892, %v890
    %v967 = vpack.c.b16 %v893, %v891
    %v968 = vpack.c.b16 %v896, %v894
    %v969 = vpack.c.b16 %v897, %v895
    %v970 = vpack.c.b16 %v900, %v898
    %v971 = vpack.c.b16 %v901, %v899
    %v972 = vpack.c.b16 %v904, %v902
    %v973 = vpack.c.b16 %v905, %v903
    %v974 = vpack.c.b16 %v908, %v906
    %v975 = vpack.c.b16 %v909, %v907
    %v976 = vpack.c.b16 %v912, %v910
    %v977 = vpack.c.b16 %v913, %v911
    %1042 = vmatprep.subr.bf16.mxu0 %v929
    %1043 = vmatpush1.bf16.msra.mxu0 %v928
    %1044 = vmatprep.subr.bf16.mxu0 %v927
    %1045 = vmatpush1.bf16.msra.mxu0 %v926
    %1046 = vmatprep.subr.bf16.mxu0 %v925
    %1047 = vmatpush1.bf16.msra.mxu0 %v924
    %1048 = vmatprep.subr.bf16.mxu0 %v923
    %1049 = vmatpush1.bf16.msra.mxu0 %v922
    %1050 = vmatprep.subr.bf16.mxu0 %v921
    %1051 = vmatpush1.bf16.msra.mxu0 %v920
    %1052 = vmatprep.subr.bf16.mxu0 %v919
    %1053 = vmatpush1.bf16.msra.mxu0 %v918
    %1054 = vmatprep.subr.bf16.mxu0 %v917
    %1055 = vmatpush1.bf16.msra.mxu0 %v916
    %1056 = vmatprep.subr.bf16.mxu0 %v915
    %1057 = vmatpush1.bf16.msra.mxu0 %v914
    %1058 = vmatprep.subr.bf16.mxu0 %v945
    %1059 = vmatpush2.bf16.msra.mxu0 %v944
    %1060 = vmatprep.subr.bf16.mxu0 %v943
    %1061 = vmatpush2.bf16.msra.mxu0 %v942
    %1062 = vmatprep.subr.bf16.mxu0 %v941
    %1063 = vmatpush2.bf16.msra.mxu0 %v940
    %1064 = vmatprep.subr.bf16.mxu0 %v939
    %1065 = vmatpush2.bf16.msra.mxu0 %v938
    %1066 = vmatprep.subr.bf16.mxu0 %v937
    %1067 = vmatpush2.bf16.msra.mxu0 %v936
    %1068 = vmatprep.subr.bf16.mxu0 %v935
    %1069 = vmatpush2.bf16.msra.mxu0 %v934
    %1070 = vmatprep.subr.bf16.mxu0 %v933
    %1071 = vmatpush2.bf16.msra.mxu0 %v932
    %1072 = vmatprep.subr.bf16.mxu0 %v931
    %1073 = vmatpush2.bf16.msra.mxu0 %v930
    %1074 = vmatprep.mubr.bf16.mxu0 %v643
    %1075 = vmatmul.mubr.bf16.gmra.mxu0 %v642
    %v1076 = vpop.f32.mrf.mxu0
    %v1077 = vadd.f32 %v715, %v1076
    %v1078 = vpop.f32.mrf.mxu0
    %v1079 = vadd.f32 %v719, %v1078
    %v1080 = vpop.f32.mrf.mxu0
    %v1081 = vadd.f32 %v715, %v1080
    %v1082 = vpop.f32.mrf.mxu0
    %v1083 = vadd.f32 %v719, %v1082
    %1084 = vdwg.mxu0
    %1085 = vmatprep.subr.bf16.mxu0 %v961
    %1086 = vmatpush1.bf16.msra.mxu0 %v960
    %1087 = vmatprep.subr.bf16.mxu0 %v959
    %1088 = vmatpush1.bf16.msra.mxu0 %v958
    %1089 = vmatprep.subr.bf16.mxu0 %v957
    %1090 = vmatpush1.bf16.msra.mxu0 %v956
    %1091 = vmatprep.subr.bf16.mxu0 %v955
    %1092 = vmatpush1.bf16.msra.mxu0 %v954
    %1093 = vmatprep.subr.bf16.mxu0 %v953
    %1094 = vmatpush1.bf16.msra.mxu0 %v952
    %1095 = vmatprep.subr.bf16.mxu0 %v951
    %1096 = vmatpush1.bf16.msra.mxu0 %v950
    %1097 = vmatprep.subr.bf16.mxu0 %v949
    %1098 = vmatpush1.bf16.msra.mxu0 %v948
    %1099 = vmatprep.subr.bf16.mxu0 %v947
    %1100 = vmatpush1.bf16.msra.mxu0 %v946
    %1101 = vmatprep.subr.bf16.mxu0 %v977
    %1102 = vmatpush2.bf16.msra.mxu0 %v976
    %1103 = vmatprep.subr.bf16.mxu0 %v975
    %1104 = vmatpush2.bf16.msra.mxu0 %v974
    %1105 = vmatprep.subr.bf16.mxu0 %v973
    %1106 = vmatpush2.bf16.msra.mxu0 %v972
    %1107 = vmatprep.subr.bf16.mxu0 %v971
    %1108 = vmatpush2.bf16.msra.mxu0 %v970
    %1109 = vmatprep.subr.bf16.mxu0 %v969
    %1110 = vmatpush2.bf16.msra.mxu0 %v968
    %1111 = vmatprep.subr.bf16.mxu0 %v967
    %1112 = vmatpush2.bf16.msra.mxu0 %v966
    %1113 = vmatprep.subr.bf16.mxu0 %v965
    %1114 = vmatpush2.bf16.msra.mxu0 %v964
    %1115 = vmatprep.subr.bf16.mxu0 %v963
    %1116 = vmatpush2.bf16.msra.mxu0 %v962
    %1117 = vmatprep.mubr.bf16.mxu0 %v645
    %1118 = vmatmul.mubr.bf16.gmra.mxu0 %v644
    %v1119 = vpop.f32.mrf.mxu0
    %v1120 = vadd.f32 %v1077, %v1119
    %v1121 = vpop.f32.mrf.mxu0
    %v1122 = vadd.f32 %v1079, %v1121
    %v1123 = vpop.f32.mrf.mxu0
    %v1124 = vadd.f32 %v1081, %v1123
    %v1125 = vpop.f32.mrf.mxu0
    %v1126 = vadd.f32 %v1083, %v1125
    %1127 = vdwg.mxu0
    %v1128 = vmax.f32 %v1120, 0.0
    %v1129 = vmax.f32 %v1122, 0.0
    %v1130 = vmax.f32 %v1124, 0.0
    %v1131 = vmax.f32 %v1126, 0.0
    %v1132 = vpack.c.bf16 %v1130, %v1128
    %v1133 = vpack.c.bf16 %v1131, %v1129
    %v1134 = vld [vmem:[%s7] sm:$0xf]
    %v1135 = vld [vmem:[%s7 + $0x4] sm:$0xf]
    %v1136 = vld [vmem:[%s7 + $0x8] sm:$0xf]
    %v1137 = vld [vmem:[%s7 + $0xc] sm:$0xf]
    %v1138 = vld [vmem:[%s7 + $0x10] sm:$0xf]
    %v1139 = vld [vmem:[%s7 + $0x14] sm:$0xf]
    %v1140 = vld [vmem:[%s7 + $0x18] sm:$0xf]
    %v1141 = vld [vmem:[%s7 + $0x1c] sm:$0xf]
    %v1142 = vld [vmem:[%s7 + $0x20] sm:$0xf]
    %v1143 = vld [vmem:[%s7 + $0x24] sm:$0xf]
    %v1144 = vld [vmem:[%s7 + $0x28] sm:$0xf]
    %v1145 = vld [vmem:[%s7 + $0x2c] sm:$0xf]
    %v1146 = vld [vmem:[%s7 + $0x30] sm:$0xf]
    %v1147 = vld [vmem:[%s7 + $0x34] sm:$0xf]
    %v1148 = vld [vmem:[%s7 + $0x38] sm:$0xf]
    %v1149 = vld [vmem:[%s7 + $0x3c] sm:$0xf]
    %v1150 = vld [vmem:[%s7 + $0x40] sm:$0xf]
    %v1151 = vld [vmem:[%s7 + $0x44] sm:$0xf]
    %v1152 = vld [vmem:[%s7 + $0x48] sm:$0xf]
    %v1153 = vld [vmem:[%s7 + $0x4c] sm:$0xf]
    %v1154 = vld [vmem:[%s7 + $0x50] sm:$0xf]
    %v1155 = vld [vmem:[%s7 + $0x54] sm:$0xf]
    %v1156 = vld [vmem:[%s7 + $0x58] sm:$0xf]
    %v1157 = vld [vmem:[%s7 + $0x5c] sm:$0xf]
    %v1158 = vld [vmem:[%s7 + $0x60] sm:$0xf]
    %v1159 = vld [vmem:[%s7 + $0x64] sm:$0xf]
    %v1160 = vld [vmem:[%s7 + $0x68] sm:$0xf]
    %v1161 = vld [vmem:[%s7 + $0x6c] sm:$0xf]
    %v1162 = vld [vmem:[%s7 + $0x70] sm:$0xf]
    %v1163 = vld [vmem:[%s7 + $0x74] sm:$0xf]
    %v1164 = vld [vmem:[%s7 + $0x78] sm:$0xf]
    %v1165 = vld [vmem:[%s7 + $0x7c] sm:$0xf]
    %v1166 = vld [vmem:[%s8] sm:$0x1]
    %v1168 = vlaneseq
    %v1169 = vshrl.u32 %v1168, 7
    %v1170 = vsub.s32 0, %v1169
    %v1171 = vrot.slane %v1166, %v1170
    %v1205 = vunpack.c.l.b16 %v1134
    %v1206 = vunpack.c.l.b16 %v1135
    %v1207 = vunpack.c.l.b16 %v1136
    %v1208 = vunpack.c.l.b16 %v1137
    %v1209 = vunpack.c.l.b16 %v1138
    %v1210 = vunpack.c.l.b16 %v1139
    %v1211 = vunpack.c.l.b16 %v1140
    %v1212 = vunpack.c.l.b16 %v1141
    %v1213 = vunpack.c.l.b16 %v1142
    %v1214 = vunpack.c.l.b16 %v1143
    %v1215 = vunpack.c.l.b16 %v1144
    %v1216 = vunpack.c.l.b16 %v1145
    %v1217 = vunpack.c.l.b16 %v1146
    %v1218 = vunpack.c.l.b16 %v1147
    %v1219 = vunpack.c.l.b16 %v1148
    %v1220 = vunpack.c.l.b16 %v1149
    %v1221 = vunpack.c.l.b16 %v1150
    %v1222 = vunpack.c.l.b16 %v1151
    %v1223 = vunpack.c.l.b16 %v1152
    %v1224 = vunpack.c.l.b16 %v1153
    %v1225 = vunpack.c.l.b16 %v1154
    %v1226 = vunpack.c.l.b16 %v1155
    %v1227 = vunpack.c.l.b16 %v1156
    %v1228 = vunpack.c.l.b16 %v1157
    %v1229 = vunpack.c.l.b16 %v1158
    %v1230 = vunpack.c.l.b16 %v1159
    %v1231 = vunpack.c.l.b16 %v1160
    %v1232 = vunpack.c.l.b16 %v1161
    %v1233 = vunpack.c.l.b16 %v1162
    %v1234 = vunpack.c.l.b16 %v1163
    %v1235 = vunpack.c.l.b16 %v1164
    %v1236 = vunpack.c.l.b16 %v1165
    %v1237 = vpack.c.b16 %v1206, %v1205
    %v1238 = vpack.c.b16 %v1208, %v1207
    %v1239 = vpack.c.b16 %v1210, %v1209
    %v1240 = vpack.c.b16 %v1212, %v1211
    %v1241 = vpack.c.b16 %v1214, %v1213
    %v1242 = vpack.c.b16 %v1216, %v1215
    %v1243 = vpack.c.b16 %v1218, %v1217
    %v1244 = vpack.c.b16 %v1220, %v1219
    %v1245 = vpack.c.b16 %v1222, %v1221
    %v1246 = vpack.c.b16 %v1224, %v1223
    %v1247 = vpack.c.b16 %v1226, %v1225
    %v1248 = vpack.c.b16 %v1228, %v1227
    %v1249 = vpack.c.b16 %v1230, %v1229
    %v1250 = vpack.c.b16 %v1232, %v1231
    %v1251 = vpack.c.b16 %v1234, %v1233
    %v1252 = vpack.c.b16 %v1236, %v1235
    %1269 = vmatprep.subr.bf16.mxu0 0
    %1270 = vmatpush1.bf16.msra.mxu0 %v1244
    %1271 = vmatprep.subr.bf16.mxu0 0
    %1272 = vmatpush1.bf16.msra.mxu0 %v1243
    %1273 = vmatprep.subr.bf16.mxu0 0
    %1274 = vmatpush1.bf16.msra.mxu0 %v1242
    %1275 = vmatprep.subr.bf16.mxu0 0
    %1276 = vmatpush1.bf16.msra.mxu0 %v1241
    %1277 = vmatprep.subr.bf16.mxu0 0
    %1278 = vmatpush1.bf16.msra.mxu0 %v1240
    %1279 = vmatprep.subr.bf16.mxu0 0
    %1280 = vmatpush1.bf16.msra.mxu0 %v1239
    %1281 = vmatprep.subr.bf16.mxu0 0
    %1282 = vmatpush1.bf16.msra.mxu0 %v1238
    %1283 = vmatprep.subr.bf16.mxu0 0
    %1284 = vmatpush1.bf16.msra.mxu0 %v1237
    %1285 = vmatprep.subr.bf16.mxu0 0
    %1286 = vmatpush2.bf16.msra.mxu0 %v1252
    %1287 = vmatprep.subr.bf16.mxu0 0
    %1288 = vmatpush2.bf16.msra.mxu0 %v1251
    %1289 = vmatprep.subr.bf16.mxu0 0
    %1290 = vmatpush2.bf16.msra.mxu0 %v1250
    %1291 = vmatprep.subr.bf16.mxu0 0
    %1292 = vmatpush2.bf16.msra.mxu0 %v1249
    %1293 = vmatprep.subr.bf16.mxu0 0
    %1294 = vmatpush2.bf16.msra.mxu0 %v1248
    %1295 = vmatprep.subr.bf16.mxu0 0
    %1296 = vmatpush2.bf16.msra.mxu0 %v1247
    %1297 = vmatprep.subr.bf16.mxu0 0
    %1298 = vmatpush2.bf16.msra.mxu0 %v1246
    %1299 = vmatprep.subr.bf16.mxu0 0
    %1300 = vmatpush2.bf16.msra.mxu0 %v1245
    %1301 = vmatprep.mubr.bf16.mxu0 %v1133
    %1302 = vmatmul.mubr.bf16.gmra.mxu0 %v1132
    %v1303 = vpop.f32.mrf.mxu0
    %v1304 = vadd.f32 %v1171, %v1303
    %v1305 = vpop.f32.mrf.mxu0
    %v1306 = vpop.f32.mrf.mxu0
    %v1307 = vadd.f32 %v1171, %v1306
    %v1308 = vpop.f32.mrf.mxu0
    %1309 = vdwg.mxu0
    %vm1310 = vcmask 31744
    %1311 = vst.msk [vmem:[%s9] sm:$0xff] %vm1310, %v1304
    %1312 = vst.msk [vmem:[%s9 + $0x8] sm:$0xff] %vm1310, %v1307
    // Predicated region
    $region46: #{fully_connected_forward.1} parent=1 // pred_check
      _
    $region47: #{fully_connected_forward.1} parent=1 // pred_check_branch
      %1314 = sbr.rel (0) target = $region49
    $region48: #{fully_connected_forward.1} parent=1 // pred_region
      _
    $region49: #{fully_connected_forward.1} parent=1 // pred_fallthru
      _
    // Predicated region
    $region50: #{fully_connected_forward.1} parent=1 // pred_check
      _
    $region51: #{fully_connected_forward.1} parent=1 // pred_check_branch
      %1316 = sbr.rel (0) target = $region53
    $region52: #{fully_connected_forward.1} parent=1 // pred_region
      _
    $region53: #{fully_connected_forward.1} parent=1 // pred_fallthru
      _
    %1317 = vsyncpa [#allocation3], 1
    %1318 = vsyncpa [#allocation5], 1

</llo_original>
